<compile_context>
chip_gen: v6e
topology: v6e:2x2x1
jax: 0.10.0
libtpu: 0.0.40
codegen_flags: <defaults>
</compile_context>

<pallas_src>
import functools
from math import sqrt

import jax
import jax.numpy as jnp
from jax.experimental import pallas as pl
from jax.experimental.pallas import tpu as pltpu


# ----------------------------- Pallas kernel ------------------------------ #

def _semlp_fused_kernel(*refs, acts, approx_silu):
    """Fused (linear -> folded eval-mode BatchNorm -> [SiLU]) x num_layers.

    refs = (x_ref, w1_ref, b1_ref, w2_ref, b2_ref, ..., o_ref)
    Weights are bf16 (MXU); biases / elementwise math stay f32 (v5e VPU/EUP
    have no bf16 path, and the f32 vreg pressure at C<=32 is negligible).
    """
    x_ref = refs[0]
    o_ref = refs[-1]
    wb_refs = refs[1:-1]

    h = x_ref[...]                                    # (tm, C0), f32 row tile
    for li, apply_act in enumerate(acts):
        w = wb_refs[2 * li][...]                      # (C_in, C_out), bf16
        b = wb_refs[2 * li + 1][...]                  # (1, C_out),   f32
        y = jnp.dot(h.astype(w.dtype), w,
                    preferred_element_type=jnp.float32)
        y = y + b                                     # linear bias + folded BN
        if apply_act:
            if approx_silu:
                # exp on the EUP, approx reciprocal also on the EUP ->
                # activation is nearly free under the matmul/store path.
                y = y * pl.reciprocal(1.0 + jnp.exp(-y), approx=True)
            else:
                y = y / (1.0 + jnp.exp(-y))           # exact sigmoid (VALU div)
        h = y
    o_ref[...] = h.astype(o_ref.dtype)


# --------------------------- tile-size selection --------------------------- #

def _has_two_tensorcores():
    """True on chips whose 'parallel' grid axis is sharded across 2 TCs."""
    try:
        kind = jax.devices()[0].device_kind.lower()
    except Exception:
        return False
    return any(tag in kind for tag in ("v7", "7x", "v4", "v5p"))


def _pick_tm(n, dual_core):
    """Row-tile size.

    Single-TC (v5e/v6e): the grid is a serial loop, so the largest tile
    (fewest ~0.35us grid steps) wins; cap at 2048 rows (still <~1 MB/step).
    Dual-TC (v7x/megacore): prefer an EVEN step count >= 2 so both cores get
    equal work. Multiples of 16 keep bf16 sublane tiling happy.
    """
    if not dual_core:
        tm = -(-n // 16) * 16
        return max(16, min(2048, tm))
    for tm in (1024, 512, 256, 128, 64, 32, 16):      # even step count first
        steps = -(-n // tm)
        if steps >= 2 and steps % 2 == 0:
            return tm
    for tm in (1024, 512, 256, 128, 64, 32, 16):      # else any >= 2 steps
        if -(-n // tm) >= 2:
            return tm
    return 16


# ----------------------------- forward wrapper ----------------------------- #

def _fold_bn(p):
    """Fold eval-mode BatchNorm ('component', affine, scalar irreps) into the
    preceding linear, in f32 (cast to bf16 happens once, later)."""
    w, b = p["w"], p["b"]
    bn = p.get("bn")
    if bn is not None:
        scale = bn["weight"] / jnp.sqrt(bn["var"] + bn["eps"])
        shift = bn["bias"] - bn["mean"] * scale
        w = w * scale[None, :]
        b = b * scale + shift
    return w, b, bool(p["apply_act"])


def semlp_forward(params, x, *, compute_dtype=jnp.bfloat16, approx_silu=True):
    """Whole SEMLP forward (eval-mode BatchNorm folded) in one pallas_call."""
    N, C_in = x.shape
    folded = [_fold_bn(p) for p in params]
    assert C_in == folded[0][0].shape[0]
    C_out = folded[-1][0].shape[1]

    tm = _pick_tm(N, _has_two_tensorcores())
    n_pad = pl.cdiv(N, tm) * tm
    # Pad rows only when actually needed (never at the demo size); x stays f32
    # (the in-kernel astype handles the bf16 MXU cast, so no extra HBM pass).
    xp = x if n_pad == N else jnp.pad(x, ((0, n_pad - N), (0, 0)))

    operands = [xp]
    in_specs = [pl.BlockSpec((tm, C_in), lambda i: (i, 0))]
    acts = []
    for w, b, apply_act in folded:
        ci, co = w.shape
        operands.append(w.astype(compute_dtype))                # VMEM-resident
        operands.append(b.reshape(1, co).astype(jnp.float32))   # VMEM-resident
        # Constant index_map -> Pallas pipeline fetches these once and skips
        # the copy on every later step (block index never changes).
        in_specs.append(pl.BlockSpec((ci, co), lambda i: (0, 0)))
        in_specs.append(pl.BlockSpec((1, co), lambda i: (0, 0)))
        acts.append(apply_act)

    kernel = functools.partial(_semlp_fused_kernel, acts=tuple(acts),
                               approx_silu=approx_silu)
    out = pl.pallas_call(
        kernel,
        # True C_out (block last dim == full array dim -> legal), f32 like x:
        # real 32 B/row of writeback instead of a 512 B/row padded slab.
        out_shape=jax.ShapeDtypeStruct((n_pad, C_out), x.dtype),
        grid_spec=pltpu.PrefetchScalarGridSpec(
            num_scalar_prefetch=0,
            grid=(n_pad // tm,),
            in_specs=in_specs,
            out_specs=pl.BlockSpec((tm, C_out), lambda i: (i, 0)),
        ),
        compiler_params=pltpu.CompilerParams(
            dimension_semantics=("parallel",)),
    )(*operands)
    return out if n_pad == N else out[:N]


# ------------------------- SEMLP parameter setup --------------------------- #

def _parse_scalar_irreps(s):
    # "32x0e" -> 32  (scalar-only specialization)
    mul, ir = s.split("x")
    assert ir == "0e", "only scalar (0e) irreps are supported in this kernel"
    return int(mul)


def init_semlp_params(key, irreps, plain_last=True, use_norm_in_first=True,
                      eps=1e-5, nontrivial_bn_stats=True):
    """Deterministic init mirroring O3TensorProduct / BatchNorm __init__.

    With `nontrivial_bn_stats=True` the BatchNorm buffers/affine params are
    given non-trivial values (as if trained) so the kernel's BN fold is
    actually exercised and independently checked against an unfolded
    reference; with False they match torch's __init__ defaults
    (running_mean=0, running_var=1, weight=1, bias=0).
    """
    dims = [_parse_scalar_irreps(s) for s in irreps]

    layer_cfgs = [(dims[0], dims[1], use_norm_in_first, True)]
    for c_in, c_out in zip(dims[1:-2], dims[2:-1]):
        layer_cfgs.append((c_in, c_out, True, True))
    if plain_last:
        layer_cfgs.append((dims[-2], dims[-1], False, False))
    else:
        layer_cfgs.append((dims[-2], dims[-1], True, True))

    params = []
    for c_in, c_out, has_norm, has_act in layer_cfgs:
        key, kw, kb, km, kv, kg, kbb = jax.random.split(key, 7)
        sqrt_k = 1.0 / sqrt(c_in)  # fan_in = mul_1 * mul_2, mul_2 = 1 ("1x0e")
        w = jax.random.uniform(kw, (c_in, c_out), jnp.float32, -sqrt_k, sqrt_k)
        b = jax.random.uniform(kb, (c_out,), jnp.float32, -sqrt_k, sqrt_k)
        bn = None
        if has_norm:
            if nontrivial_bn_stats:
                bn = dict(
                    mean=0.1 * jax.random.normal(km, (c_out,), jnp.float32),
                    var=jax.random.uniform(kv, (c_out,), jnp.float32, 0.5, 1.5),
                    weight=jax.random.uniform(kg, (c_out,), jnp.float32, 0.8, 1.2),
                    bias=0.1 * jax.random.normal(kbb, (c_out,), jnp.float32),
                    eps=eps)
            else:
                bn = dict(mean=jnp.zeros((c_out,), jnp.float32),
                          var=jnp.ones((c_out,), jnp.float32),
                          weight=jnp.ones((c_out,), jnp.float32),
                          bias=jnp.zeros((c_out,), jnp.float32),
                          eps=eps)
        # else: torch.nn.Identity() -> nothing to fold
        params.append(dict(w=w, b=b, bn=bn, apply_act=has_act))
    return params


def semlp_reference(params, x):
    """Pure-JAX f32 reference: linear, then BatchNorm applied UNFOLDED
    (eval mode, 'component', affine, scalar irreps), then SiLU."""
    h = x.astype(jnp.float32)
    for p in params:
        h = h @ p["w"] + p["b"]
        bn = p.get("bn")
        if bn is not None:
            h = (h - bn["mean"]) / jnp.sqrt(bn["var"] + bn["eps"]) \
                * bn["weight"] + bn["bias"]
        if p["apply_act"]:
            h = h * jax.nn.sigmoid(h)
    return h


# ---------------------------------- main ----------------------------------- #

if __name__ == "__main__":
    key = jax.random.PRNGKey(0)
    k_x, k_p = jax.random.split(key)

    # irreps tuple: 4 -> 32 -> 32 -> 8 scalar channels, plain last layer.
    irreps = ("4x0e", "32x0e", "32x0e", "8x0e")
    N = 128  # number of nodes / samples

    x = jax.random.normal(k_x, (N, 4), dtype=jnp.float32)
    params = init_semlp_params(k_p, irreps, plain_last=True,
                               use_norm_in_first=True)

    out = semlp_forward(params, x)
    out = jax.block_until_ready(out)

    assert out.shape == (N, 8) and out.dtype == jnp.float32
    assert bool(jnp.all(jnp.isfinite(out)))

    ref = semlp_reference(params, x)
    assert bool(jnp.allclose(out, ref, atol=5e-2, rtol=5e-2)), (
        "kernel deviates from f32 reference beyond bf16/approx-SiLU tolerance")

    print("KERNEL_OK")
</pallas_src>

<mosaic_0001>
module attributes {stable_mosaic.version = 11 : i64} {
  func.func @_semlp_fused_kernel(%arg0: i32, %arg1: memref<128x4xf32, #tpu.memory_space<vmem>>, %arg2: memref<4x32xbf16, #tpu.memory_space<vmem>>, %arg3: memref<1x32xf32, #tpu.memory_space<vmem>>, %arg4: memref<32x32xbf16, #tpu.memory_space<vmem>>, %arg5: memref<1x32xf32, #tpu.memory_space<vmem>>, %arg6: memref<32x8xbf16, #tpu.memory_space<vmem>>, %arg7: memref<1x8xf32, #tpu.memory_space<vmem>>, %arg8: memref<128x8xf32, #tpu.memory_space<vmem>>) attributes {dimension_semantics = [#tpu.dimension_semantics<parallel>], iteration_bounds = array<i64: 1>, scalar_prefetch = 0 : i64, scratch_operands = 0 : i64, tpu.core_type = #tpu.core_type<tc>, window_params = [{transform_indices = @transform_0, window_bounds = array<i64: 128, 4>}, {pipeline_mode = #tpu.pipeline_mode<synchronous>, transform_indices = @transform_1, window_bounds = array<i64: 4, 32>}, {pipeline_mode = #tpu.pipeline_mode<synchronous>, transform_indices = @transform_2, window_bounds = array<i64: 1, 32>}, {pipeline_mode = #tpu.pipeline_mode<synchronous>, transform_indices = @transform_3, window_bounds = array<i64: 32, 32>}, {pipeline_mode = #tpu.pipeline_mode<synchronous>, transform_indices = @transform_4, window_bounds = array<i64: 1, 32>}, {pipeline_mode = #tpu.pipeline_mode<synchronous>, transform_indices = @transform_5, window_bounds = array<i64: 32, 8>}, {pipeline_mode = #tpu.pipeline_mode<synchronous>, transform_indices = @transform_6, window_bounds = array<i64: 1, 8>}, {transform_indices = @transform_7, window_bounds = array<i64: 128, 8>}]} {
    %c0 = arith.constant 0 : index
    %c0_0 = arith.constant 0 : index
    %0 = vector.load %arg1[%c0, %c0_0] : memref<128x4xf32, #tpu.memory_space<vmem>>, vector<128x4xf32>
    %c0_1 = arith.constant 0 : index
    %c0_2 = arith.constant 0 : index
    %1 = vector.load %arg2[%c0_1, %c0_2] : memref<4x32xbf16, #tpu.memory_space<vmem>>, vector<4x32xbf16>
    %c0_3 = arith.constant 0 : index
    %c0_4 = arith.constant 0 : index
    %2 = vector.load %arg3[%c0_3, %c0_4] : memref<1x32xf32, #tpu.memory_space<vmem>>, vector<1x32xf32>
    %3 = arith.truncf %0 : vector<128x4xf32> to vector<128x4xbf16>
    %cst = arith.constant dense<0.000000e+00> : vector<128x32xf32>
    %4 = tpu.matmul %3, %1, %cst {dimension_numbers = #tpu.dot_dimension_numbers<[1], [0], [0], [1], [0, 0, 1, 1], [], []>} : vector<128x4xbf16>, vector<4x32xbf16>, vector<128x32xf32> -> vector<128x32xf32>
    %5 = vector.broadcast %2 : vector<1x32xf32> to vector<128x32xf32>
    %6 = arith.addf %4, %5 : vector<128x32xf32>
    %cst_5 = arith.constant 0.000000e+00 : f32
    %7 = vector.broadcast %cst_5 : f32 to vector<128x32xf32>
    %8 = arith.subf %7, %6 : vector<128x32xf32>
    %9 = math.exp %8 : vector<128x32xf32>
    %cst_6 = arith.constant 1.000000e+00 : f32
    %10 = vector.broadcast %cst_6 : f32 to vector<128x32xf32>
    %11 = arith.addf %10, %9 : vector<128x32xf32>
    %12 = tpu.reciprocal %11 {approx = true} : vector<128x32xf32> -> vector<128x32xf32>
    %13 = arith.mulf %6, %12 : vector<128x32xf32>
    %c0_7 = arith.constant 0 : index
    %c0_8 = arith.constant 0 : index
    %14 = vector.load %arg4[%c0_7, %c0_8] : memref<32x32xbf16, #tpu.memory_space<vmem>>, vector<32x32xbf16>
    %c0_9 = arith.constant 0 : index
    %c0_10 = arith.constant 0 : index
    %15 = vector.load %arg5[%c0_9, %c0_10] : memref<1x32xf32, #tpu.memory_space<vmem>>, vector<1x32xf32>
    %16 = arith.truncf %13 : vector<128x32xf32> to vector<128x32xbf16>
    %cst_11 = arith.constant dense<0.000000e+00> : vector<128x32xf32>
    %17 = tpu.matmul %16, %14, %cst_11 {dimension_numbers = #tpu.dot_dimension_numbers<[1], [0], [0], [1], [0, 0, 1, 1], [], []>} : vector<128x32xbf16>, vector<32x32xbf16>, vector<128x32xf32> -> vector<128x32xf32>
    %18 = vector.broadcast %15 : vector<1x32xf32> to vector<128x32xf32>
    %19 = arith.addf %17, %18 : vector<128x32xf32>
    %cst_12 = arith.constant 0.000000e+00 : f32
    %20 = vector.broadcast %cst_12 : f32 to vector<128x32xf32>
    %21 = arith.subf %20, %19 : vector<128x32xf32>
    %22 = math.exp %21 : vector<128x32xf32>
    %cst_13 = arith.constant 1.000000e+00 : f32
    %23 = vector.broadcast %cst_13 : f32 to vector<128x32xf32>
    %24 = arith.addf %23, %22 : vector<128x32xf32>
    %25 = tpu.reciprocal %24 {approx = true} : vector<128x32xf32> -> vector<128x32xf32>
    %26 = arith.mulf %19, %25 : vector<128x32xf32>
    %c0_14 = arith.constant 0 : index
    %c0_15 = arith.constant 0 : index
    %27 = vector.load %arg6[%c0_14, %c0_15] : memref<32x8xbf16, #tpu.memory_space<vmem>>, vector<32x8xbf16>
    %c0_16 = arith.constant 0 : index
    %c0_17 = arith.constant 0 : index
    %28 = vector.load %arg7[%c0_16, %c0_17] : memref<1x8xf32, #tpu.memory_space<vmem>>, vector<1x8xf32>
    %29 = arith.truncf %26 : vector<128x32xf32> to vector<128x32xbf16>
    %cst_18 = arith.constant dense<0.000000e+00> : vector<128x8xf32>
    %30 = tpu.matmul %29, %27, %cst_18 {dimension_numbers = #tpu.dot_dimension_numbers<[1], [0], [0], [1], [0, 0, 1, 1], [], []>} : vector<128x32xbf16>, vector<32x8xbf16>, vector<128x8xf32> -> vector<128x8xf32>
    %31 = vector.broadcast %28 : vector<1x8xf32> to vector<128x8xf32>
    %32 = arith.addf %30, %31 : vector<128x8xf32>
    %c0_19 = arith.constant 0 : index
    %c0_20 = arith.constant 0 : index
    %33 = vector.load %arg8[%c0_19, %c0_20] : memref<128x8xf32, #tpu.memory_space<vmem>>, vector<128x8xf32>
    tpu.vector_store %arg8[%c0_19, %c0_20], %32 {strides = array<i32>} : memref<128x8xf32, #tpu.memory_space<vmem>>, vector<128x8xf32>,
    return
  }
  func.func @transform_0(%arg0: i32) -> (i32, i32) {
    %c0_i32 = arith.constant 0 : i32
    %c0_i32_0 = arith.constant 0 : i32
    return %arg0, %c0_i32 : i32, i32
  }
  func.func @transform_1(%arg0: i32) -> (i32, i32) {
    %c0_i32 = arith.constant 0 : i32
    %c0_i32_0 = arith.constant 0 : i32
    %c0_i32_1 = arith.constant 0 : i32
    return %c0_i32, %c0_i32_0 : i32, i32
  }
  func.func @transform_2(%arg0: i32) -> (i32, i32) {
    %c0_i32 = arith.constant 0 : i32
    %c0_i32_0 = arith.constant 0 : i32
    %c0_i32_1 = arith.constant 0 : i32
    return %c0_i32, %c0_i32_0 : i32, i32
  }
  func.func @transform_3(%arg0: i32) -> (i32, i32) {
    %c0_i32 = arith.constant 0 : i32
    %c0_i32_0 = arith.constant 0 : i32
    %c0_i32_1 = arith.constant 0 : i32
    return %c0_i32, %c0_i32_0 : i32, i32
  }
  func.func @transform_4(%arg0: i32) -> (i32, i32) {
    %c0_i32 = arith.constant 0 : i32
    %c0_i32_0 = arith.constant 0 : i32
    %c0_i32_1 = arith.constant 0 : i32
    return %c0_i32, %c0_i32_0 : i32, i32
  }
  func.func @transform_5(%arg0: i32) -> (i32, i32) {
    %c0_i32 = arith.constant 0 : i32
    %c0_i32_0 = arith.constant 0 : i32
    %c0_i32_1 = arith.constant 0 : i32
    return %c0_i32, %c0_i32_0 : i32, i32
  }
  func.func @transform_6(%arg0: i32) -> (i32, i32) {
    %c0_i32 = arith.constant 0 : i32
    %c0_i32_0 = arith.constant 0 : i32
    %c0_i32_1 = arith.constant 0 : i32
    return %c0_i32, %c0_i32_0 : i32, i32
  }
  func.func @transform_7(%arg0: i32) -> (i32, i32) {
    %c0_i32 = arith.constant 0 : i32
    %c0_i32_0 = arith.constant 0 : i32
    return %arg0, %c0_i32 : i32, i32
  }
}

</mosaic_0001>

<llo_original>
// kernel: tpu_custom_call.1
$region0: #{tpu_custom_call.1}
  #allocation0 [shape = 'u32[]', space=smem, size = 0x4, offset = 0x4, fixed_abs, tag = 'smem constant byte address 0x4 - core index']
  #allocation1 [shape = 'u32[144,128]{1,0:T(1,128)}', space=vmem, size = 0x12000, scoped, tag = 'internal scratch']
  %s0 = inlined_call_operand.vmem [shape: f32[128,4], index: 0, kind: input, shape index: {}]
  %s1 = inlined_call_operand.vmem [shape: bf16[4,32], index: 1, kind: input, shape index: {}]
  %s2 = inlined_call_operand.vmem [shape: f32[1,32], index: 2, kind: input, shape index: {}]
  %s3 = inlined_call_operand.vmem [shape: bf16[32,32], index: 3, kind: input, shape index: {}]
  %s4 = inlined_call_operand.vmem [shape: f32[1,32], index: 4, kind: input, shape index: {}]
  %s5 = inlined_call_operand.vmem [shape: bf16[32,8], index: 5, kind: input, shape index: {}]
  %s6 = inlined_call_operand.vmem [shape: f32[1,8], index: 6, kind: input, shape index: {}]
  %s7 = inlined_call_operand.vmem [shape: f32[128,8], index: 7, kind: output, shape index: {}]
  %s8 = sld [smem:[#allocation0]]
  $region38: #{tpu_custom_call.1} parent=0
    _
  %s10 = ssub.s32 1, %s8
  %s11 = scalar_select 0, %s10, %s8
  // Predicated region
  $region2: #{tpu_custom_call.1} parent=0 // pred_check
    _
  $region3: #{tpu_custom_call.1} parent=0 // pred_check_branch
    %13 = sbr.rel (0) target = $region5
  $region4: #{tpu_custom_call.1} parent=0 // pred_region
    _
  $region5: #{tpu_custom_call.1} parent=0 // pred_fallthru
    _
  // Predicated region
  $region6: #{tpu_custom_call.1} parent=0 // pred_check
    _
  $region7: #{tpu_custom_call.1} parent=0 // pred_check_branch
    %15 = sbr.rel (0) target = $region9
  $region8: #{tpu_custom_call.1} parent=0 // pred_region
    _
  $region9: #{tpu_custom_call.1} parent=0 // pred_fallthru
    _
  // Predicated region
  $region10: #{tpu_custom_call.1} parent=0 // pred_check
    _
  $region11: #{tpu_custom_call.1} parent=0 // pred_check_branch
    %17 = sbr.rel (0) target = $region13
  $region12: #{tpu_custom_call.1} parent=0 // pred_region
    _
  $region13: #{tpu_custom_call.1} parent=0 // pred_fallthru
    _
  // Predicated region
  $region14: #{tpu_custom_call.1} parent=0 // pred_check
    _
  $region15: #{tpu_custom_call.1} parent=0 // pred_check_branch
    %19 = sbr.rel (0) target = $region17
  $region16: #{tpu_custom_call.1} parent=0 // pred_region
    _
  $region17: #{tpu_custom_call.1} parent=0 // pred_fallthru
    _
  // Predicated region
  $region18: #{tpu_custom_call.1} parent=0 // pred_check
    _
  $region19: #{tpu_custom_call.1} parent=0 // pred_check_branch
    %21 = sbr.rel (0) target = $region21
  $region20: #{tpu_custom_call.1} parent=0 // pred_region
    _
  $region21: #{tpu_custom_call.1} parent=0 // pred_fallthru
    _
  // Predicated region
  $region22: #{tpu_custom_call.1} parent=0 // pred_check
    _
  $region23: #{tpu_custom_call.1} parent=0 // pred_check_branch
    %23 = sbr.rel (0) target = $region25
  $region24: #{tpu_custom_call.1} parent=0 // pred_region
    _
  $region25: #{tpu_custom_call.1} parent=0 // pred_fallthru
    _
  // Predicated region
  $region26: #{tpu_custom_call.1} parent=0 // pred_check
    _
  $region27: #{tpu_custom_call.1} parent=0 // pred_check_branch
    %25 = sbr.rel (0) target = $region29
  $region28: #{tpu_custom_call.1} parent=0 // pred_region
    _
  $region29: #{tpu_custom_call.1} parent=0 // pred_fallthru
    _
  %v27 = vld [vmem:[%s0] sm:$0xff]
  %v28 = vld [vmem:[%s0 + $0x8] sm:$0xff]
  %v29 = vld [vmem:[%s0 + $0x10] sm:$0xff]
  %v30 = vld [vmem:[%s0 + $0x18] sm:$0xff]
  %v31 = vld [vmem:[%s0 + $0x20] sm:$0xff]
  %v32 = vld [vmem:[%s0 + $0x28] sm:$0xff]
  %v33 = vld [vmem:[%s0 + $0x30] sm:$0xff]
  %v34 = vld [vmem:[%s0 + $0x38] sm:$0xff]
  %v35 = vld [vmem:[%s0 + $0x40] sm:$0xff]
  %v36 = vld [vmem:[%s0 + $0x48] sm:$0xff]
  %v37 = vld [vmem:[%s0 + $0x50] sm:$0xff]
  %v38 = vld [vmem:[%s0 + $0x58] sm:$0xff]
  %v39 = vld [vmem:[%s0 + $0x60] sm:$0xff]
  %v40 = vld [vmem:[%s0 + $0x68] sm:$0xff]
  %v41 = vld [vmem:[%s0 + $0x70] sm:$0xff]
  %v42 = vld [vmem:[%s0 + $0x78] sm:$0xff]
  %v43 = vld [vmem:[%s1] sm:$0x3]
  %v44 = vld [vmem:[%s2] sm:$0x1]
  %v45 = vpack.c.bf16 %v28, %v27
  %v46 = vpack.c.bf16 %v30, %v29
  %v47 = vpack.c.bf16 %v32, %v31
  %v48 = vpack.c.bf16 %v34, %v33
  %v49 = vpack.c.bf16 %v36, %v35
  %v50 = vpack.c.bf16 %v38, %v37
  %v51 = vpack.c.bf16 %v40, %v39
  %v52 = vpack.c.bf16 %v42, %v41
  %v54 = vlaneseq
  %v55 = vshrl.u32 %v54, 7
  %v56 = vsub.s32 0, %v55
  %v57 = vrot.slane %v44, %v56
  %vm59 = vcmask 31744
  %v61 = vsel %vm59, %v45, 0
  %v64 = vsel %vm59, %v46, 0
  %v67 = vsel %vm59, %v47, 0
  %v70 = vsel %vm59, %v48, 0
  %v73 = vsel %vm59, %v49, 0
  %v76 = vsel %vm59, %v50, 0
  %v79 = vsel %vm59, %v51, 0
  %v82 = vsel %vm59, %v52, 0
  %vm84 = vcmask 1041408
  %v86 = vsel %vm84, %v43, 0
  %88 = vmatprep.subr.bf16.mxu0 0
  %89 = vmatpush1.bf16.msra.mxu0 0
  %90 = vmatprep.subr.bf16.mxu0 0
  %91 = vmatpush1.bf16.msra.mxu0 0
  %92 = vmatprep.subr.bf16.mxu0 0
  %93 = vmatpush1.bf16.msra.mxu0 0
  %94 = vmatprep.subr.bf16.mxu0 0
  %95 = vmatpush1.bf16.msra.mxu0 0
  %96 = vmatprep.subr.bf16.mxu0 0
  %97 = vmatpush1.bf16.msra.mxu0 0
  %98 = vmatprep.subr.bf16.mxu0 0
  %99 = vmatpush1.bf16.msra.mxu0 0
  %100 = vmatprep.subr.bf16.mxu0 0
  %101 = vmatpush1.bf16.msra.mxu0 0
  %102 = vmatprep.subr.bf16.mxu0 0
  %103 = vmatpush1.bf16.msra.mxu0 %v86
  %104 = vmatprep.subr.bf16.mxu0 0
  %105 = vmatpush2.bf16.msra.mxu0 0
  %106 = vmatprep.subr.bf16.mxu0 0
  %107 = vmatpush2.bf16.msra.mxu0 0
  %108 = vmatprep.subr.bf16.mxu0 0
  %109 = vmatpush2.bf16.msra.mxu0 0
  %110 = vmatprep.subr.bf16.mxu0 0
  %111 = vmatpush2.bf16.msra.mxu0 0
  %112 = vmatprep.subr.bf16.mxu0 0
  %113 = vmatpush2.bf16.msra.mxu0 0
  %114 = vmatprep.subr.bf16.mxu0 0
  %115 = vmatpush2.bf16.msra.mxu0 0
  %116 = vmatprep.subr.bf16.mxu0 0
  %117 = vmatpush2.bf16.msra.mxu0 0
  %118 = vmatprep.subr.bf16.mxu0 0
  %119 = vmatpush2.bf16.msra.mxu0 0
  %120 = vmatprep.mubr.bf16.mxu0 0
  %121 = vmatmul.mubr.bf16.gmra.mxu0 %v61
  %v122 = vpop.f32.mrf.mxu0
  %v123 = vadd.f32 %v57, %v122
  %v124 = vpop.f32.mrf.mxu0
  %v125 = vpop.f32.mrf.mxu0
  %v126 = vadd.f32 %v57, %v125
  %v127 = vpop.f32.mrf.mxu0
  %128 = vmatprep.mubr.bf16.mxu0 0
  %129 = vmatmul.mubr.bf16.gmra.mxu0 %v64
  %v130 = vpop.f32.mrf.mxu0
  %v131 = vadd.f32 %v57, %v130
  %v132 = vpop.f32.mrf.mxu0
  %v133 = vpop.f32.mrf.mxu0
  %v134 = vadd.f32 %v57, %v133
  %v135 = vpop.f32.mrf.mxu0
  %136 = vmatprep.mubr.bf16.mxu0 0
  %137 = vmatmul.mubr.bf16.gmra.mxu0 %v67
  %v138 = vpop.f32.mrf.mxu0
  %v139 = vadd.f32 %v57, %v138
  %v140 = vpop.f32.mrf.mxu0
  %v141 = vpop.f32.mrf.mxu0
  %v142 = vadd.f32 %v57, %v141
  %v143 = vpop.f32.mrf.mxu0
  %144 = vmatprep.mubr.bf16.mxu0 0
  %145 = vmatmul.mubr.bf16.gmra.mxu0 %v70
  %v146 = vpop.f32.mrf.mxu0
  %v147 = vadd.f32 %v57, %v146
  %v148 = vpop.f32.mrf.mxu0
  %v149 = vpop.f32.mrf.mxu0
  %v150 = vadd.f32 %v57, %v149
  %v151 = vpop.f32.mrf.mxu0
  %152 = vmatprep.mubr.bf16.mxu0 0
  %153 = vmatmul.mubr.bf16.gmra.mxu0 %v73
  %v154 = vpop.f32.mrf.mxu0
  %v155 = vadd.f32 %v57, %v154
  %v156 = vpop.f32.mrf.mxu0
  %v157 = vpop.f32.mrf.mxu0
  %v158 = vadd.f32 %v57, %v157
  %v159 = vpop.f32.mrf.mxu0
  %160 = vmatprep.mubr.bf16.mxu0 0
  %161 = vmatmul.mubr.bf16.gmra.mxu0 %v76
  %v162 = vpop.f32.mrf.mxu0
  %v163 = vadd.f32 %v57, %v162
  %v164 = vpop.f32.mrf.mxu0
  %v165 = vpop.f32.mrf.mxu0
  %v166 = vadd.f32 %v57, %v165
  %v167 = vpop.f32.mrf.mxu0
  %168 = vmatprep.mubr.bf16.mxu0 0
  %169 = vmatmul.mubr.bf16.gmra.mxu0 %v79
  %v170 = vpop.f32.mrf.mxu0
  %v171 = vadd.f32 %v57, %v170
  %v172 = vpop.f32.mrf.mxu0
  %v173 = vpop.f32.mrf.mxu0
  %v174 = vadd.f32 %v57, %v173
  %v175 = vpop.f32.mrf.mxu0
  %176 = vmatprep.mubr.bf16.mxu0 0
  %177 = vmatmul.mubr.bf16.gmra.mxu0 %v82
  %v178 = vpop.f32.mrf.mxu0
  %v179 = vadd.f32 %v57, %v178
  %v180 = vpop.f32.mrf.mxu0
  %v181 = vpop.f32.mrf.mxu0
  %v182 = vadd.f32 %v57, %v181
  %v183 = vpop.f32.mrf.mxu0
  %184 = vdwg.mxu0
  %v185 = vsub.f32 0.0, %v123
  %v186 = vsub.f32 0.0, %v126
  %v187 = vsub.f32 0.0, %v131
  %v188 = vsub.f32 0.0, %v134
  %v189 = vsub.f32 0.0, %v139
  %v190 = vsub.f32 0.0, %v142
  %v191 = vsub.f32 0.0, %v147
  %v192 = vsub.f32 0.0, %v150
  %v193 = vsub.f32 0.0, %v155
  %v194 = vsub.f32 0.0, %v158
  %v195 = vsub.f32 0.0, %v163
  %v196 = vsub.f32 0.0, %v166
  %v197 = vsub.f32 0.0, %v171
  %v198 = vsub.f32 0.0, %v174
  %v199 = vsub.f32 0.0, %v179
  %v200 = vsub.f32 0.0, %v182
  %v201 = vmul.f32 %v185, 1.442695
  %v202 = vpow.pop %v201
  %v203 = vmul.f32 %v186, 1.442695
  %v204 = vpow.pop %v203
  %v205 = vmul.f32 %v187, 1.442695
  %v206 = vpow.pop %v205
  %v207 = vmul.f32 %v188, 1.442695
  %v208 = vpow.pop %v207
  %v209 = vmul.f32 %v189, 1.442695
  %v210 = vpow.pop %v209
  %v211 = vmul.f32 %v190, 1.442695
  %v212 = vpow.pop %v211
  %v213 = vmul.f32 %v191, 1.442695
  %v214 = vpow.pop %v213
  %v215 = vmul.f32 %v192, 1.442695
  %v216 = vpow.pop %v215
  %v217 = vmul.f32 %v193, 1.442695
  %v218 = vpow.pop %v217
  %v219 = vmul.f32 %v194, 1.442695
  %v220 = vpow.pop %v219
  %v221 = vmul.f32 %v195, 1.442695
  %v222 = vpow.pop %v221
  %v223 = vmul.f32 %v196, 1.442695
  %v224 = vpow.pop %v223
  %v225 = vmul.f32 %v197, 1.442695
  %v226 = vpow.pop %v225
  %v227 = vmul.f32 %v198, 1.442695
  %v228 = vpow.pop %v227
  %v229 = vmul.f32 %v199, 1.442695
  %v230 = vpow.pop %v229
  %v231 = vmul.f32 %v200, 1.442695
  %v232 = vpow.pop %v231
  %v233 = vadd.f32 %v202, 1.0
  %v234 = vadd.f32 %v204, 1.0
  %v235 = vadd.f32 %v206, 1.0
  %v236 = vadd.f32 %v208, 1.0
  %v237 = vadd.f32 %v210, 1.0
  %v238 = vadd.f32 %v212, 1.0
  %v239 = vadd.f32 %v214, 1.0
  %v240 = vadd.f32 %v216, 1.0
  %v241 = vadd.f32 %v218, 1.0
  %v242 = vadd.f32 %v220, 1.0
  %v243 = vadd.f32 %v222, 1.0
  %v244 = vadd.f32 %v224, 1.0
  %v245 = vadd.f32 %v226, 1.0
  %v246 = vadd.f32 %v228, 1.0
  %v247 = vadd.f32 %v230, 1.0
  %v248 = vadd.f32 %v232, 1.0
  %v249 = vrcp.pop %v233
  %v250 = vrcp.pop %v234
  %v251 = vrcp.pop %v235
  %v252 = vrcp.pop %v236
  %v253 = vrcp.pop %v237
  %v254 = vrcp.pop %v238
  %v255 = vrcp.pop %v239
  %v256 = vrcp.pop %v240
  %v257 = vrcp.pop %v241
  %v258 = vrcp.pop %v242
  %v259 = vrcp.pop %v243
  %v260 = vrcp.pop %v244
  %v261 = vrcp.pop %v245
  %v262 = vrcp.pop %v246
  %v263 = vrcp.pop %v247
  %v264 = vrcp.pop %v248
  %v265 = vmul.f32 %v123, %v249
  %v266 = vmul.f32 %v126, %v250
  %v267 = vmul.f32 %v131, %v251
  %v268 = vmul.f32 %v134, %v252
  %v269 = vmul.f32 %v139, %v253
  %v270 = vmul.f32 %v142, %v254
  %v271 = vmul.f32 %v147, %v255
  %v272 = vmul.f32 %v150, %v256
  %v273 = vmul.f32 %v155, %v257
  %v274 = vmul.f32 %v158, %v258
  %v275 = vmul.f32 %v163, %v259
  %v276 = vmul.f32 %v166, %v260
  %v277 = vmul.f32 %v171, %v261
  %v278 = vmul.f32 %v174, %v262
  %v279 = vmul.f32 %v179, %v263
  %v280 = vmul.f32 %v182, %v264
  %v281 = vld [vmem:[%s3] sm:$0xf]
  %v282 = vld [vmem:[%s3 + $0x4] sm:$0xf]
  %v283 = vld [vmem:[%s3 + $0x8] sm:$0xf]
  %v284 = vld [vmem:[%s3 + $0xc] sm:$0xf]
  %v285 = vld [vmem:[%s4] sm:$0x1]
  %v286 = vpack.c.bf16 %v266, %v265
  %v287 = vpack.c.bf16 %v268, %v267
  %v288 = vpack.c.bf16 %v270, %v269
  %v289 = vpack.c.bf16 %v272, %v271
  %v290 = vpack.c.bf16 %v274, %v273
  %v291 = vpack.c.bf16 %v276, %v275
  %v292 = vpack.c.bf16 %v278, %v277
  %v293 = vpack.c.bf16 %v280, %v279
  %v295 = vlaneseq
  %v296 = vshrl.u32 %v295, 7
  %v297 = vsub.s32 0, %v296
  %v298 = vrot.slane %v285, %v297
  %v304 = vunpack.c.l.b16 %v281
  %v305 = vunpack.c.l.b16 %v282
  %v306 = vunpack.c.l.b16 %v283
  %v307 = vunpack.c.l.b16 %v284
  %v308 = vpack.c.b16 %v305, %v304
  %v309 = vpack.c.b16 %v307, %v306
  %vm312 = vcmask 261120
  %v314 = vsel %vm312, %v286, 0
  %v317 = vsel %vm312, %v287, 0
  %v320 = vsel %vm312, %v288, 0
  %v323 = vsel %vm312, %v289, 0
  %v326 = vsel %vm312, %v290, 0
  %v329 = vsel %vm312, %v291, 0
  %v332 = vsel %vm312, %v292, 0
  %v335 = vsel %vm312, %v293, 0
  %337 = vmatprep.subr.bf16.mxu0 0
  %338 = vmatpush1.bf16.msra.mxu0 0
  %339 = vmatprep.subr.bf16.mxu0 0
  %340 = vmatpush1.bf16.msra.mxu0 0
  %341 = vmatprep.subr.bf16.mxu0 0
  %342 = vmatpush1.bf16.msra.mxu0 0
  %343 = vmatprep.subr.bf16.mxu0 0
  %344 = vmatpush1.bf16.msra.mxu0 0
  %345 = vmatprep.subr.bf16.mxu0 0
  %346 = vmatpush1.bf16.msra.mxu0 0
  %347 = vmatprep.subr.bf16.mxu0 0
  %348 = vmatpush1.bf16.msra.mxu0 0
  %349 = vmatprep.subr.bf16.mxu0 0
  %350 = vmatpush1.bf16.msra.mxu0 %v309
  %351 = vmatprep.subr.bf16.mxu0 0
  %352 = vmatpush1.bf16.msra.mxu0 %v308
  %353 = vmatprep.subr.bf16.mxu0 0
  %354 = vmatpush2.bf16.msra.mxu0 0
  %355 = vmatprep.subr.bf16.mxu0 0
  %356 = vmatpush2.bf16.msra.mxu0 0
  %357 = vmatprep.subr.bf16.mxu0 0
  %358 = vmatpush2.bf16.msra.mxu0 0
  %359 = vmatprep.subr.bf16.mxu0 0
  %360 = vmatpush2.bf16.msra.mxu0 0
  %361 = vmatprep.subr.bf16.mxu0 0
  %362 = vmatpush2.bf16.msra.mxu0 0
  %363 = vmatprep.subr.bf16.mxu0 0
  %364 = vmatpush2.bf16.msra.mxu0 0
  %365 = vmatprep.subr.bf16.mxu0 0
  %366 = vmatpush2.bf16.msra.mxu0 0
  %367 = vmatprep.subr.bf16.mxu0 0
  %368 = vmatpush2.bf16.msra.mxu0 0
  %369 = vmatprep.mubr.bf16.mxu0 0
  %370 = vmatmul.mubr.bf16.gmra.mxu0 %v314
  %v371 = vpop.f32.mrf.mxu0
  %v372 = vadd.f32 %v298, %v371
  %v373 = vpop.f32.mrf.mxu0
  %v374 = vpop.f32.mrf.mxu0
  %v375 = vadd.f32 %v298, %v374
  %v376 = vpop.f32.mrf.mxu0
  %377 = vmatprep.mubr.bf16.mxu0 0
  %378 = vmatmul.mubr.bf16.gmra.mxu0 %v317
  %v379 = vpop.f32.mrf.mxu0
  %v380 = vadd.f32 %v298, %v379
  %v381 = vpop.f32.mrf.mxu0
  %v382 = vpop.f32.mrf.mxu0
  %v383 = vadd.f32 %v298, %v382
  %v384 = vpop.f32.mrf.mxu0
  %385 = vmatprep.mubr.bf16.mxu0 0
  %386 = vmatmul.mubr.bf16.gmra.mxu0 %v320
  %v387 = vpop.f32.mrf.mxu0
  %v388 = vadd.f32 %v298, %v387
  %v389 = vpop.f32.mrf.mxu0
  %v390 = vpop.f32.mrf.mxu0
  %v391 = vadd.f32 %v298, %v390
  %v392 = vpop.f32.mrf.mxu0
  %393 = vmatprep.mubr.bf16.mxu0 0
  %394 = vmatmul.mubr.bf16.gmra.mxu0 %v323
  %v395 = vpop.f32.mrf.mxu0
  %v396 = vadd.f32 %v298, %v395
  %v397 = vpop.f32.mrf.mxu0
  %v398 = vpop.f32.mrf.mxu0
  %v399 = vadd.f32 %v298, %v398
  %v400 = vpop.f32.mrf.mxu0
  %401 = vmatprep.mubr.bf16.mxu0 0
  %402 = vmatmul.mubr.bf16.gmra.mxu0 %v326
  %v403 = vpop.f32.mrf.mxu0
  %v404 = vadd.f32 %v298, %v403
  %v405 = vpop.f32.mrf.mxu0
  %v406 = vpop.f32.mrf.mxu0
  %v407 = vadd.f32 %v298, %v406
  %v408 = vpop.f32.mrf.mxu0
  %409 = vmatprep.mubr.bf16.mxu0 0
  %410 = vmatmul.mubr.bf16.gmra.mxu0 %v329
  %v411 = vpop.f32.mrf.mxu0
  %v412 = vadd.f32 %v298, %v411
  %v413 = vpop.f32.mrf.mxu0
  %v414 = vpop.f32.mrf.mxu0
  %v415 = vadd.f32 %v298, %v414
  %v416 = vpop.f32.mrf.mxu0
  %417 = vmatprep.mubr.bf16.mxu0 0
  %418 = vmatmul.mubr.bf16.gmra.mxu0 %v332
  %v419 = vpop.f32.mrf.mxu0
  %v420 = vadd.f32 %v298, %v419
  %v421 = vpop.f32.mrf.mxu0
  %v422 = vpop.f32.mrf.mxu0
  %v423 = vadd.f32 %v298, %v422
  %v424 = vpop.f32.mrf.mxu0
  %425 = vmatprep.mubr.bf16.mxu0 0
  %426 = vmatmul.mubr.bf16.gmra.mxu0 %v335
  %v427 = vpop.f32.mrf.mxu0
  %v428 = vadd.f32 %v298, %v427
  %v429 = vpop.f32.mrf.mxu0
  %v430 = vpop.f32.mrf.mxu0
  %v431 = vadd.f32 %v298, %v430
  %v432 = vpop.f32.mrf.mxu0
  %433 = vdwg.mxu0
  %v434 = vsub.f32 0.0, %v372
  %v435 = vsub.f32 0.0, %v375
  %v436 = vsub.f32 0.0, %v380
  %v437 = vsub.f32 0.0, %v383
  %v438 = vsub.f32 0.0, %v388
  %v439 = vsub.f32 0.0, %v391
  %v440 = vsub.f32 0.0, %v396
  %v441 = vsub.f32 0.0, %v399
  %v442 = vsub.f32 0.0, %v404
  %v443 = vsub.f32 0.0, %v407
  %v444 = vsub.f32 0.0, %v412
  %v445 = vsub.f32 0.0, %v415
  %v446 = vsub.f32 0.0, %v420
  %v447 = vsub.f32 0.0, %v423
  %v448 = vsub.f32 0.0, %v428
  %v449 = vsub.f32 0.0, %v431
  %v450 = vmul.f32 %v434, 1.442695
  %v451 = vpow.pop %v450
  %v452 = vmul.f32 %v435, 1.442695
  %v453 = vpow.pop %v452
  %v454 = vmul.f32 %v436, 1.442695
  %v455 = vpow.pop %v454
  %v456 = vmul.f32 %v437, 1.442695
  %v457 = vpow.pop %v456
  %v458 = vmul.f32 %v438, 1.442695
  %v459 = vpow.pop %v458
  %v460 = vmul.f32 %v439, 1.442695
  %v461 = vpow.pop %v460
  %v462 = vmul.f32 %v440, 1.442695
  %v463 = vpow.pop %v462
  %v464 = vmul.f32 %v441, 1.442695
  %v465 = vpow.pop %v464
  %v466 = vmul.f32 %v442, 1.442695
  %v467 = vpow.pop %v466
  %v468 = vmul.f32 %v443, 1.442695
  %v469 = vpow.pop %v468
  %v470 = vmul.f32 %v444, 1.442695
  %v471 = vpow.pop %v470
  %v472 = vmul.f32 %v445, 1.442695
  %v473 = vpow.pop %v472
  %v474 = vmul.f32 %v446, 1.442695
  %v475 = vpow.pop %v474
  %v476 = vmul.f32 %v447, 1.442695
  %v477 = vpow.pop %v476
  %v478 = vmul.f32 %v448, 1.442695
  %v479 = vpow.pop %v478
  %v480 = vmul.f32 %v449, 1.442695
  %v481 = vpow.pop %v480
  %v482 = vadd.f32 %v451, 1.0
  %v483 = vadd.f32 %v453, 1.0
  %v484 = vadd.f32 %v455, 1.0
  %v485 = vadd.f32 %v457, 1.0
  %v486 = vadd.f32 %v459, 1.0
  %v487 = vadd.f32 %v461, 1.0
  %v488 = vadd.f32 %v463, 1.0
  %v489 = vadd.f32 %v465, 1.0
  %v490 = vadd.f32 %v467, 1.0
  %v491 = vadd.f32 %v469, 1.0
  %v492 = vadd.f32 %v471, 1.0
  %v493 = vadd.f32 %v473, 1.0
  %v494 = vadd.f32 %v475, 1.0
  %v495 = vadd.f32 %v477, 1.0
  %v496 = vadd.f32 %v479, 1.0
  %v497 = vadd.f32 %v481, 1.0
  %v498 = vrcp.pop %v482
  %v499 = vrcp.pop %v483
  %v500 = vrcp.pop %v484
  %v501 = vrcp.pop %v485
  %v502 = vrcp.pop %v486
  %v503 = vrcp.pop %v487
  %v504 = vrcp.pop %v488
  %v505 = vrcp.pop %v489
  %v506 = vrcp.pop %v490
  %v507 = vrcp.pop %v491
  %v508 = vrcp.pop %v492
  %v509 = vrcp.pop %v493
  %v510 = vrcp.pop %v494
  %v511 = vrcp.pop %v495
  %v512 = vrcp.pop %v496
  %v513 = vrcp.pop %v497
  %v514 = vmul.f32 %v372, %v498
  %v515 = vmul.f32 %v375, %v499
  %v516 = vmul.f32 %v380, %v500
  %v517 = vmul.f32 %v383, %v501
  %v518 = vmul.f32 %v388, %v502
  %v519 = vmul.f32 %v391, %v503
  %v520 = vmul.f32 %v396, %v504
  %v521 = vmul.f32 %v399, %v505
  %v522 = vmul.f32 %v404, %v506
  %v523 = vmul.f32 %v407, %v507
  %v524 = vmul.f32 %v412, %v508
  %v525 = vmul.f32 %v415, %v509
  %v526 = vmul.f32 %v420, %v510
  %v527 = vmul.f32 %v423, %v511
  %v528 = vmul.f32 %v428, %v512
  %v529 = vmul.f32 %v431, %v513
  %v530 = vld [vmem:[%s5] sm:$0xf]
  %v531 = vld [vmem:[%s5 + $0x4] sm:$0xf]
  %v532 = vld [vmem:[%s5 + $0x8] sm:$0xf]
  %v533 = vld [vmem:[%s5 + $0xc] sm:$0xf]
  %v534 = vld [vmem:[%s6] sm:$0x1]
  %v535 = vpack.c.bf16 %v515, %v514
  %v536 = vpack.c.bf16 %v517, %v516
  %v537 = vpack.c.bf16 %v519, %v518
  %v538 = vpack.c.bf16 %v521, %v520
  %v539 = vpack.c.bf16 %v523, %v522
  %v540 = vpack.c.bf16 %v525, %v524
  %v541 = vpack.c.bf16 %v527, %v526
  %v542 = vpack.c.bf16 %v529, %v528
  %v544 = vlaneseq
  %v545 = vshrl.u32 %v544, 7
  %v546 = vsub.s32 0, %v545
  %v547 = vrot.slane %v534, %v546
  %v553 = vunpack.c.l.b16 %v530
  %v554 = vunpack.c.l.b16 %v531
  %v555 = vunpack.c.l.b16 %v532
  %v556 = vunpack.c.l.b16 %v533
  %v557 = vpack.c.b16 %v554, %v553
  %v558 = vpack.c.b16 %v556, %v555
  %v562 = vsel %vm312, %v535, 0
  %v565 = vsel %vm312, %v536, 0
  %v568 = vsel %vm312, %v537, 0
  %v571 = vsel %vm312, %v538, 0
  %v574 = vsel %vm312, %v539, 0
  %v577 = vsel %vm312, %v540, 0
  %v580 = vsel %vm312, %v541, 0
  %v583 = vsel %vm312, %v542, 0
  %585 = vmatprep.subr.bf16.mxu0 0
  %586 = vmatpush1.bf16.msra.mxu0 0
  %587 = vmatprep.subr.bf16.mxu0 0
  %588 = vmatpush1.bf16.msra.mxu0 0
  %589 = vmatprep.subr.bf16.mxu0 0
  %590 = vmatpush1.bf16.msra.mxu0 0
  %591 = vmatprep.subr.bf16.mxu0 0
  %592 = vmatpush1.bf16.msra.mxu0 0
  %593 = vmatprep.subr.bf16.mxu0 0
  %594 = vmatpush1.bf16.msra.mxu0 0
  %595 = vmatprep.subr.bf16.mxu0 0
  %596 = vmatpush1.bf16.msra.mxu0 0
  %597 = vmatprep.subr.bf16.mxu0 0
  %598 = vmatpush1.bf16.msra.mxu0 %v558
  %599 = vmatprep.subr.bf16.mxu0 0
  %600 = vmatpush1.bf16.msra.mxu0 %v557
  %601 = vmatprep.subr.bf16.mxu0 0
  %602 = vmatpush2.bf16.msra.mxu0 0
  %603 = vmatprep.subr.bf16.mxu0 0
  %604 = vmatpush2.bf16.msra.mxu0 0
  %605 = vmatprep.subr.bf16.mxu0 0
  %606 = vmatpush2.bf16.msra.mxu0 0
  %607 = vmatprep.subr.bf16.mxu0 0
  %608 = vmatpush2.bf16.msra.mxu0 0
  %609 = vmatprep.subr.bf16.mxu0 0
  %610 = vmatpush2.bf16.msra.mxu0 0
  %611 = vmatprep.subr.bf16.mxu0 0
  %612 = vmatpush2.bf16.msra.mxu0 0
  %613 = vmatprep.subr.bf16.mxu0 0
  %614 = vmatpush2.bf16.msra.mxu0 0
  %615 = vmatprep.subr.bf16.mxu0 0
  %616 = vmatpush2.bf16.msra.mxu0 0
  %617 = vmatprep.mubr.bf16.mxu0 0
  %618 = vmatmul.mubr.bf16.gmra.mxu0 %v562
  %v619 = vpop.f32.mrf.mxu0
  %v620 = vadd.f32 %v547, %v619
  %v621 = vpop.f32.mrf.mxu0
  %v622 = vpop.f32.mrf.mxu0
  %v623 = vadd.f32 %v547, %v622
  %v624 = vpop.f32.mrf.mxu0
  %625 = vmatprep.mubr.bf16.mxu0 0
  %626 = vmatmul.mubr.bf16.gmra.mxu0 %v565
  %v627 = vpop.f32.mrf.mxu0
  %v628 = vadd.f32 %v547, %v627
  %v629 = vpop.f32.mrf.mxu0
  %v630 = vpop.f32.mrf.mxu0
  %v631 = vadd.f32 %v547, %v630
  %v632 = vpop.f32.mrf.mxu0
  %633 = vmatprep.mubr.bf16.mxu0 0
  %634 = vmatmul.mubr.bf16.gmra.mxu0 %v568
  %v635 = vpop.f32.mrf.mxu0
  %v636 = vadd.f32 %v547, %v635
  %v637 = vpop.f32.mrf.mxu0
  %v638 = vpop.f32.mrf.mxu0
  %v639 = vadd.f32 %v547, %v638
  %v640 = vpop.f32.mrf.mxu0
  %641 = vmatprep.mubr.bf16.mxu0 0
  %642 = vmatmul.mubr.bf16.gmra.mxu0 %v571
  %v643 = vpop.f32.mrf.mxu0
  %v644 = vadd.f32 %v547, %v643
  %v645 = vpop.f32.mrf.mxu0
  %v646 = vpop.f32.mrf.mxu0
  %v647 = vadd.f32 %v547, %v646
  %v648 = vpop.f32.mrf.mxu0
  %649 = vmatprep.mubr.bf16.mxu0 0
  %650 = vmatmul.mubr.bf16.gmra.mxu0 %v574
  %v651 = vpop.f32.mrf.mxu0
  %v652 = vadd.f32 %v547, %v651
  %v653 = vpop.f32.mrf.mxu0
  %v654 = vpop.f32.mrf.mxu0
  %v655 = vadd.f32 %v547, %v654
  %v656 = vpop.f32.mrf.mxu0
  %657 = vmatprep.mubr.bf16.mxu0 0
  %658 = vmatmul.mubr.bf16.gmra.mxu0 %v577
  %v659 = vpop.f32.mrf.mxu0
  %v660 = vadd.f32 %v547, %v659
  %v661 = vpop.f32.mrf.mxu0
  %v662 = vpop.f32.mrf.mxu0
  %v663 = vadd.f32 %v547, %v662
  %v664 = vpop.f32.mrf.mxu0
  %665 = vmatprep.mubr.bf16.mxu0 0
  %666 = vmatmul.mubr.bf16.gmra.mxu0 %v580
  %v667 = vpop.f32.mrf.mxu0
  %v668 = vadd.f32 %v547, %v667
  %v669 = vpop.f32.mrf.mxu0
  %v670 = vpop.f32.mrf.mxu0
  %v671 = vadd.f32 %v547, %v670
  %v672 = vpop.f32.mrf.mxu0
  %673 = vmatprep.mubr.bf16.mxu0 0
  %674 = vmatmul.mubr.bf16.gmra.mxu0 %v583
  %v675 = vpop.f32.mrf.mxu0
  %v676 = vadd.f32 %v547, %v675
  %v677 = vpop.f32.mrf.mxu0
  %v678 = vpop.f32.mrf.mxu0
  %v679 = vadd.f32 %v547, %v678
  %v680 = vpop.f32.mrf.mxu0
  %681 = vdwg.mxu0
  %vm682 = vcmask 64512
  %683 = vst.msk [vmem:[%s7] sm:$0xff] %vm682, %v620
  %684 = vst.msk [vmem:[%s7 + $0x8] sm:$0xff] %vm682, %v623
  %685 = vst.msk [vmem:[%s7 + $0x10] sm:$0xff] %vm682, %v628
  %686 = vst.msk [vmem:[%s7 + $0x18] sm:$0xff] %vm682, %v631
  %687 = vst.msk [vmem:[%s7 + $0x20] sm:$0xff] %vm682, %v636
  %688 = vst.msk [vmem:[%s7 + $0x28] sm:$0xff] %vm682, %v639
  %689 = vst.msk [vmem:[%s7 + $0x30] sm:$0xff] %vm682, %v644
  %690 = vst.msk [vmem:[%s7 + $0x38] sm:$0xff] %vm682, %v647
  %691 = vst.msk [vmem:[%s7 + $0x40] sm:$0xff] %vm682, %v652
  %692 = vst.msk [vmem:[%s7 + $0x48] sm:$0xff] %vm682, %v655
  %693 = vst.msk [vmem:[%s7 + $0x50] sm:$0xff] %vm682, %v660
  %694 = vst.msk [vmem:[%s7 + $0x58] sm:$0xff] %vm682, %v663
  %695 = vst.msk [vmem:[%s7 + $0x60] sm:$0xff] %vm682, %v668
  %696 = vst.msk [vmem:[%s7 + $0x68] sm:$0xff] %vm682, %v671
  %697 = vst.msk [vmem:[%s7 + $0x70] sm:$0xff] %vm682, %v676
  %698 = vst.msk [vmem:[%s7 + $0x78] sm:$0xff] %vm682, %v679
  // Predicated region
  $region30: #{tpu_custom_call.1} parent=0 // pred_check
    _
  $region31: #{tpu_custom_call.1} parent=0 // pred_check_branch
    %700 = sbr.rel (0) target = $region33
  $region32: #{tpu_custom_call.1} parent=0 // pred_region
    _
  $region33: #{tpu_custom_call.1} parent=0 // pred_fallthru
    _
  // Predicated region
  $region34: #{tpu_custom_call.1} parent=0 // pred_check
    _
  $region35: #{tpu_custom_call.1} parent=0 // pred_check_branch
    %702 = sbr.rel (0) target = $region37
  $region36: #{tpu_custom_call.1} parent=0 // pred_region
    _
  $region37: #{tpu_custom_call.1} parent=0 // pred_fallthru
    _

</llo_original>
